<compile_context>
chip_gen: v7x
topology: tpu7x:2x2x1
jax: 0.10.0
libtpu: 0.0.40
codegen_flags: <defaults>
</compile_context>

<pallas_src>
import functools

import numpy as np
import jax
import jax.numpy as jnp
from jax.experimental import pallas as pl
from jax.experimental.pallas import tpu as pltpu

INPUT_DIM = 13     # L
NUM_CLASSES = 6
C1 = 64
C2 = 128
BN_EPS = 1e-5


def _round_up(x, m):
    return ((x + m - 1) // m) * m


def _emotion_cnn_kernel(x_ref, p1_ref, w2_ref, p2_ref, wl_ref, out_ref, *,
                        seq_len, l_pad, b_tile):
    # x_ref  : (N, 1)        f32   N = b_tile * l_pad, pad rows are zero
    # p1_ref : (6, C1)       f32   [w1 tap -1, w1 tap 0, w1 tap +1, conv1 bias, bn1 scale, bn1 shift]
    # w2_ref : (3*C1, C2)    bf16  conv2 taps stacked along the contraction (K) axis
    # p2_ref : (4, C2)       f32   [conv2 bias, bn2 scale, bn2 shift, linear bias (lane padded)]
    # wl_ref : (C2, C2)      bf16  linear weight, output columns lane-padded to C2
    # out_ref: (b_tile, C2)  f32   logits in the first NUM_CLASSES lanes
    n = x_ref.shape[0]
    c1 = p1_ref.shape[1]
    c2 = p2_ref.shape[1]

    x = x_ref[...]                                                    # (N, 1)

    # Valid-position mask: rows with (row % l_pad) >= seq_len are structural padding.
    row = jax.lax.broadcasted_iota(jnp.int32, (n, 1), 0)
    mask = ((row % l_pad) < seq_len).astype(jnp.float32)              # (N, 1)

    # ---- Conv1d(1, 64, k=3, pad=1): VPU broadcast-FMA + XLU sublane rolls (no MXU) ----
    xb = jnp.broadcast_to(x, (n, c1))                                 # hoisted lane broadcast (once)
    u_m1 = xb * p1_ref[0:1, :]                                        # tap reading x[l-1]
    u_0 = xb * p1_ref[1:2, :]                                         # center tap
    u_p1 = xb * p1_ref[2:3, :]                                        # tap reading x[l+1]
    h1 = (pltpu.roll(u_m1, 1, axis=0) + u_0
          + pltpu.roll(u_p1, n - 1, axis=0)                           # roll by n-1 == roll by -1
          + p1_ref[3:4, :])
    h1 = jnp.maximum(h1, 0.0)                                         # ReLU
    h1 = h1 * p1_ref[4:5, :] + p1_ref[5:6, :]                         # folded BatchNorm1d(64)
    mask1 = jnp.broadcast_to(mask, (n, c1))                           # hoisted mask broadcast (once)
    h1 = h1 * mask1                                                   # re-zero pad rows before tap shifts

    # ---- Conv1d(64, 128, k=3, pad=1): one K-stacked MXU matmul (K=3*C1=192, bf16 in, f32 acc) ----
    # Rolls on f32 (N, C1) BEFORE the single bf16 cast (rolling packed bf16 would unpack/repack).
    taps = jnp.concatenate(
        [pltpu.roll(h1, 1, axis=0), h1, pltpu.roll(h1, n - 1, axis=0)], axis=1)   # (N, 3*C1)
    h2 = (jnp.dot(taps.astype(jnp.bfloat16), w2_ref[...],
                  preferred_element_type=jnp.float32)                 # (N, C2)
          + p2_ref[0:1, :])
    h2 = jnp.maximum(h2, 0.0)                                         # ReLU
    h2 = h2 * p2_ref[1:2, :] + p2_ref[2:3, :]                         # folded BatchNorm1d(128)

    # ---- AdaptiveAvgPool1d(1) + Flatten: mean over the seq_len valid rows ----
    mask2 = jnp.broadcast_to(mask, (n, c2))
    h2 = h2 * mask2
    pooled = jnp.sum(h2.reshape(b_tile, l_pad, c2), axis=1) * (1.0 / seq_len)     # (b_tile, C2)

    # TODO(synk): nn.Dropout(0.3) is identity in eval mode; training-mode random masking not applied.

    # ---- Linear(128, num_classes), lane-padded to 128 so the store is a full unmasked vst ----
    out_ref[...] = (jnp.dot(pooled.astype(jnp.bfloat16), wl_ref[...],
                            preferred_element_type=jnp.float32) + p2_ref[3:4, :])


@functools.partial(jax.jit, static_argnames=("b_tile",))
def emotion_cnn_forward(x, params, b_tile=128):
    """x: (B, input_dim) float32  ->  logits (B, num_classes)."""
    b, seq_len = x.shape
    c1 = params["b1"].shape[0]
    c2 = params["b2"].shape[0]
    num_classes = params["bl"].shape[0]

    l_pad = _round_up(seq_len + 1, 8)          # >= 1 trailing zero row per sample (conv zero padding)
    b_tile = max(8, min(_round_up(b, 8), (b_tile // 8) * 8))   # sublane-aligned batch tile
    b_pad = _round_up(b, b_tile)
    num_tiles = b_pad // b_tile
    n_tile = b_tile * l_pad
    n_total = b_pad * l_pad

    # Fold eval-mode BatchNorm into one scale/shift per layer (constant-weight folding).
    scale1 = params["g1"] * jax.lax.rsqrt(params["v1"] + BN_EPS)
    shift1 = params["beta1"] - params["m1"] * scale1
    scale2 = params["g2"] * jax.lax.rsqrt(params["v2"] + BN_EPS)
    shift2 = params["beta2"] - params["m2"] * scale2

    # Layer-1 parameter pack (6, C1): conv taps (offset -1, 0, +1), bias, bn scale, bn shift.
    w1 = params["w1"][:, 0, :]                                        # (C1, 3)
    p1 = jnp.stack([w1[:, 0], w1[:, 1], w1[:, 2],
                    params["b1"], scale1, shift1], axis=0)            # (6, C1)

    # Conv2 weight stacked along the contraction axis: W[j*C1 + c, o] = w2[o, c, j].
    w2 = params["w2"]                                                 # (C2, C1, 3)
    w2_stack = jnp.concatenate(
        [w2[:, :, 0].T, w2[:, :, 1].T, w2[:, :, 2].T], axis=0
    ).astype(jnp.bfloat16)                                            # (3*C1, C2)

    # Layer-2 parameter pack (4, C2): conv2 bias, bn2 scale, bn2 shift, lane-padded linear bias.
    bl_pad = jnp.zeros((c2,), jnp.float32).at[:num_classes].set(params["bl"])
    p2 = jnp.stack([params["b2"], scale2, shift2, bl_pad], axis=0)    # (4, C2)

    # Linear weight, lane-padded to a full 128-wide output.
    wl_pad = jnp.zeros((c2, c2), jnp.float32).at[:, :num_classes].set(params["wl"].T)
    wl_pad = wl_pad.astype(jnp.bfloat16)                              # (C2, C2)

    # Input laid out as (B_pad, L_pad) with zero pad rows, flattened to (N_total, 1).
    xp = jnp.zeros((b_pad, l_pad), jnp.float32).at[:b, :seq_len].set(x)
    x_flat = xp.reshape(n_total, 1)

    kernel = functools.partial(_emotion_cnn_kernel,
                               seq_len=seq_len, l_pad=l_pad, b_tile=b_tile)

    flops = (2 * n_total * 3 * c1                 # conv1 (VPU)
             + 2 * n_total * (3 * c1) * c2        # conv2 (K-stacked MXU matmul)
             + 2 * b_pad * c2 * c2)               # linear
    bytes_accessed = (4 * (x_flat.size + p1.size + p2.size + b_pad * c2)
                      + 2 * (w2_stack.size + wl_pad.size))

    out = pl.pallas_call(
        kernel,
        out_shape=jax.ShapeDtypeStruct((b_pad, c2), jnp.float32),
        grid=(num_tiles,),
        in_specs=[
            pl.BlockSpec((n_tile, 1), lambda i: (i, 0)),              # x: tiled over batch
            pl.BlockSpec((6, c1), lambda i: (0, 0)),                  # params stay resident
            pl.BlockSpec((3 * c1, c2), lambda i: (0, 0)),
            pl.BlockSpec((4, c2), lambda i: (0, 0)),
            pl.BlockSpec((c2, c2), lambda i: (0, 0)),
        ],
        out_specs=pl.BlockSpec((b_tile, c2), lambda i: (i, 0)),       # lane-dense (128-wide) store
        compiler_params=pltpu.CompilerParams(
            dimension_semantics=("parallel",)),                       # megacore on v7x
        cost_estimate=pl.CostEstimate(flops=flops, transcendentals=0,
                                      bytes_accessed=bytes_accessed),
    )(x_flat, p1, w2_stack, p2, wl_pad)

    return out[:b, :num_classes]


def init_params(key, input_dim=INPUT_DIM, num_classes=NUM_CLASSES):
    ks = jax.random.split(key, 16)

    def u(k, shape, bound):
        return jax.random.uniform(k, shape, jnp.float32, -bound, bound)

    k1 = 1.0 / np.sqrt(1 * 3)
    k2 = 1.0 / np.sqrt(C1 * 3)
    kl = 1.0 / np.sqrt(C2)
    params = dict(
        w1=u(ks[0], (C1, 1, 3), k1),        b1=u(ks[1], (C1,), k1),
        w2=u(ks[2], (C2, C1, 3), k2),       b2=u(ks[3], (C2,), k2),
        wl=u(ks[4], (num_classes, C2), kl), bl=u(ks[5], (num_classes,), kl),
        # BatchNorm eval-mode parameters / synthetic running statistics (deterministic).
        g1=1.0 + 0.1 * jax.random.normal(ks[6], (C1,)),
        beta1=0.1 * jax.random.normal(ks[7], (C1,)),
        m1=0.1 * jax.random.normal(ks[8], (C1,)),
        v1=jax.random.uniform(ks[9], (C1,), jnp.float32, 0.5, 1.5),
        g2=1.0 + 0.1 * jax.random.normal(ks[10], (C2,)),
        beta2=0.1 * jax.random.normal(ks[11], (C2,)),
        m2=0.1 * jax.random.normal(ks[12], (C2,)),
        v2=jax.random.uniform(ks[13], (C2,), jnp.float32, 0.5, 1.5),
    )
    return jax.tree_util.tree_map(lambda a: a.astype(jnp.float32), params)


def reference_forward(x, params):
    """Pure-JAX mirror of the PyTorch forward (eval mode), used only for validation."""
    xp = x[:, None, :]                                                # (B, 1, L)
    dn = ("NCH", "OIH", "NCH")
    h = jax.lax.conv_general_dilated(xp, params["w1"], (1,), [(1, 1)], dimension_numbers=dn)
    h = h + params["b1"][None, :, None]
    h = jnp.maximum(h, 0.0)
    h = (h - params["m1"][None, :, None]) / jnp.sqrt(params["v1"][None, :, None] + BN_EPS)
    h = h * params["g1"][None, :, None] + params["beta1"][None, :, None]
    h = jax.lax.conv_general_dilated(h, params["w2"], (1,), [(1, 1)], dimension_numbers=dn)
    h = h + params["b2"][None, :, None]
    h = jnp.maximum(h, 0.0)
    h = (h - params["m2"][None, :, None]) / jnp.sqrt(params["v2"][None, :, None] + BN_EPS)
    h = h * params["g2"][None, :, None] + params["beta2"][None, :, None]
    pooled = jnp.mean(h, axis=-1)                                     # (B, 128)
    return pooled @ params["wl"].T + params["bl"]                     # (B, 6)


if __name__ == "__main__":
    key = jax.random.PRNGKey(0)
    k_x, k_x2, k_p = jax.random.split(key, 3)
    params = init_params(k_p)

    # Small batch (single grid step).
    batch = 4
    x = jax.random.normal(k_x, (batch, INPUT_DIM), jnp.float32)
    out = jax.block_until_ready(emotion_cnn_forward(x, params))
    ref = reference_forward(x, params)
    assert out.shape == (batch, NUM_CLASSES), out.shape
    # bf16 MXU operands (f32 accumulation) -> slightly looser tolerance than pure f32.
    np.testing.assert_allclose(np.asarray(out), np.asarray(ref), rtol=2e-2, atol=2e-2)

    # Larger, non-multiple batch to exercise the batch grid + padding path (3 grid steps).
    batch2 = 300
    x2 = jax.random.normal(k_x2, (batch2, INPUT_DIM), jnp.float32)
    out2 = jax.block_until_ready(emotion_cnn_forward(x2, params))
    ref2 = reference_forward(x2, params)
    assert out2.shape == (batch2, NUM_CLASSES), out2.shape
    np.testing.assert_allclose(np.asarray(out2), np.asarray(ref2), rtol=2e-2, atol=2e-2)

    print("KERNEL_OK")
</pallas_src>

<mosaic_0001>
module attributes {stable_mosaic.version = 11 : i64} {
  func.func @_emotion_cnn_kernel(%arg0: i32, %arg1: memref<128x1xf32, #tpu.memory_space<vmem>>, %arg2: memref<6x64xf32, #tpu.memory_space<vmem>>, %arg3: memref<192x128xbf16, #tpu.memory_space<vmem>>, %arg4: memref<4x128xf32, #tpu.memory_space<vmem>>, %arg5: memref<128x128xbf16, #tpu.memory_space<vmem>>, %arg6: memref<8x128xf32, #tpu.memory_space<vmem>>) attributes {dimension_semantics = [#tpu.dimension_semantics<parallel>], iteration_bounds = array<i64: 1>, scalar_prefetch = 0 : i64, scratch_operands = 0 : i64, tpu.core_type = #tpu.core_type<tc>, window_params = [{transform_indices = @transform_0, window_bounds = array<i64: 128, 1>}, {pipeline_mode = #tpu.pipeline_mode<synchronous>, transform_indices = @transform_1, window_bounds = array<i64: 6, 64>}, {pipeline_mode = #tpu.pipeline_mode<synchronous>, transform_indices = @transform_2, window_bounds = array<i64: 192, 128>}, {pipeline_mode = #tpu.pipeline_mode<synchronous>, transform_indices = @transform_3, window_bounds = array<i64: 4, 128>}, {pipeline_mode = #tpu.pipeline_mode<synchronous>, transform_indices = @transform_4, window_bounds = array<i64: 128, 128>}, {transform_indices = @transform_5, window_bounds = array<i64: 8, 128>}]} {
    %c0 = arith.constant 0 : index
    %c0_0 = arith.constant 0 : index
    %0 = vector.load %arg1[%c0, %c0_0] : memref<128x1xf32, #tpu.memory_space<vmem>>, vector<128x1xf32>
    %1 = tpu.iota {dimensions = array<i32: 0>} : vector<128x1xi32>
    %c16_i32 = arith.constant 16 : i32
    %c0_i32 = arith.constant 0 : i32
    %2 = arith.cmpi eq, %c16_i32, %c0_i32 : i32
    %c1_i32 = arith.constant 1 : i32
    %3 = arith.select %2, %c1_i32, %c16_i32 : i32
    %4 = vector.broadcast %3 : i32 to vector<128x1xi32>
    %5 = arith.remsi %1, %4 : vector<128x1xi32>
    %c0_i32_1 = arith.constant 0 : i32
    %6 = vector.broadcast %c0_i32_1 : i32 to vector<128x1xi32>
    %7 = arith.cmpi ne, %5, %6 : vector<128x1xi32>
    %c0_i32_2 = arith.constant 0 : i32
    %8 = vector.broadcast %c0_i32_2 : i32 to vector<128x1xi32>
    %9 = arith.cmpi slt, %5, %8 : vector<128x1xi32>
    %c0_i32_3 = arith.constant 0 : i32
    %10 = arith.cmpi slt, %3, %c0_i32_3 : i32
    %11 = vector.broadcast %10 : i1 to vector<128x1xi1>
    %12 = vector.broadcast %11 : vector<128x1xi1> to vector<128x1xi1>
    %13 = arith.xori %9, %12 : vector<128x1xi1>
    %14 = arith.andi %13, %7 : vector<128x1xi1>
    %15 = vector.broadcast %3 : i32 to vector<128x1xi32>
    %16 = arith.addi %5, %15 : vector<128x1xi32>
    %17 = arith.select %14, %16, %5 : vector<128x1xi1>, vector<128x1xi32>
    %c13_i32 = arith.constant 13 : i32
    %18 = vector.broadcast %c13_i32 : i32 to vector<128x1xi32>
    %19 = arith.cmpi slt, %17, %18 : vector<128x1xi32>
    %20 = arith.extui %19 : vector<128x1xi1> to vector<128x1xi32>
    %21 = arith.sitofp %20 : vector<128x1xi32> to vector<128x1xf32>
    %22 = vector.shape_cast %0 : vector<128x1xf32> to vector<128x1xf32>
    %23 = vector.broadcast %22 : vector<128x1xf32> to vector<128x64xf32>
    %c0_4 = arith.constant 0 : index
    %c0_5 = arith.constant 0 : index
    %24 = vector.load %arg2[%c0_4, %c0_5] : memref<6x64xf32, #tpu.memory_space<vmem>>, vector<1x64xf32>
    %25 = vector.broadcast %24 : vector<1x64xf32> to vector<128x64xf32>
    %26 = arith.mulf %23, %25 : vector<128x64xf32>
    %c1 = arith.constant 1 : index
    %c0_6 = arith.constant 0 : index
    %27 = vector.load %arg2[%c1, %c0_6] : memref<6x64xf32, #tpu.memory_space<vmem>>, vector<1x64xf32>
    %28 = vector.broadcast %27 : vector<1x64xf32> to vector<128x64xf32>
    %29 = arith.mulf %23, %28 : vector<128x64xf32>
    %c2 = arith.constant 2 : index
    %c0_7 = arith.constant 0 : index
    %30 = vector.load %arg2[%c2, %c0_7] : memref<6x64xf32, #tpu.memory_space<vmem>>, vector<1x64xf32>
    %31 = vector.broadcast %30 : vector<1x64xf32> to vector<128x64xf32>
    %32 = arith.mulf %23, %31 : vector<128x64xf32>
    %c1_i32_8 = arith.constant 1 : i32
    %33 = tpu.dynamic_rotate %26 by %c1_i32_8 dim 0 : vector<128x64xf32>, i32 -> vector<128x64xf32>
    %34 = arith.addf %33, %29 : vector<128x64xf32>
    %c127_i32 = arith.constant 127 : i32
    %35 = tpu.dynamic_rotate %32 by %c127_i32 dim 0 : vector<128x64xf32>, i32 -> vector<128x64xf32>
    %36 = arith.addf %34, %35 : vector<128x64xf32>
    %c3 = arith.constant 3 : index
    %c0_9 = arith.constant 0 : index
    %37 = vector.load %arg2[%c3, %c0_9] : memref<6x64xf32, #tpu.memory_space<vmem>>, vector<1x64xf32>
    %38 = vector.broadcast %37 : vector<1x64xf32> to vector<128x64xf32>
    %39 = arith.addf %36, %38 : vector<128x64xf32>
    %cst = arith.constant 0.000000e+00 : f32
    %40 = vector.broadcast %cst : f32 to vector<128x64xf32>
    %41 = arith.maximumf %39, %40 : vector<128x64xf32>
    %c4 = arith.constant 4 : index
    %c0_10 = arith.constant 0 : index
    %42 = vector.load %arg2[%c4, %c0_10] : memref<6x64xf32, #tpu.memory_space<vmem>>, vector<1x64xf32>
    %43 = vector.broadcast %42 : vector<1x64xf32> to vector<128x64xf32>
    %44 = arith.mulf %41, %43 : vector<128x64xf32>
    %c5 = arith.constant 5 : index
    %c0_11 = arith.constant 0 : index
    %45 = vector.load %arg2[%c5, %c0_11] : memref<6x64xf32, #tpu.memory_space<vmem>>, vector<1x64xf32>
    %46 = vector.broadcast %45 : vector<1x64xf32> to vector<128x64xf32>
    %47 = arith.addf %44, %46 : vector<128x64xf32>
    %48 = vector.shape_cast %21 : vector<128x1xf32> to vector<128x1xf32>
    %49 = vector.broadcast %48 : vector<128x1xf32> to vector<128x64xf32>
    %50 = arith.mulf %47, %49 : vector<128x64xf32>
    %c1_i32_12 = arith.constant 1 : i32
    %51 = tpu.dynamic_rotate %50 by %c1_i32_12 dim 0 : vector<128x64xf32>, i32 -> vector<128x64xf32>
    %c127_i32_13 = arith.constant 127 : i32
    %52 = tpu.dynamic_rotate %50 by %c127_i32_13 dim 0 : vector<128x64xf32>, i32 -> vector<128x64xf32>
    %53 = tpu.concatenate %51, %50, %52 in 1 : vector<128x64xf32>, vector<128x64xf32>, vector<128x64xf32> -> vector<128x192xf32>
    %54 = arith.truncf %53 : vector<128x192xf32> to vector<128x192xbf16>
    %c0_14 = arith.constant 0 : index
    %c0_15 = arith.constant 0 : index
    %55 = vector.load %arg3[%c0_14, %c0_15] : memref<192x128xbf16, #tpu.memory_space<vmem>>, vector<192x128xbf16>
    %cst_16 = arith.constant dense<0.000000e+00> : vector<128x128xf32>
    %56 = tpu.matmul %54, %55, %cst_16 {dimension_numbers = #tpu.dot_dimension_numbers<[1], [0], [0], [1], [0, 0, 1, 1], [], []>} : vector<128x192xbf16>, vector<192x128xbf16>, vector<128x128xf32> -> vector<128x128xf32>
    %c0_17 = arith.constant 0 : index
    %c0_18 = arith.constant 0 : index
    %57 = vector.load %arg4[%c0_17, %c0_18] : memref<4x128xf32, #tpu.memory_space<vmem>>, vector<1x128xf32>
    %58 = vector.broadcast %57 : vector<1x128xf32> to vector<128x128xf32>
    %59 = arith.addf %56, %58 : vector<128x128xf32>
    %cst_19 = arith.constant 0.000000e+00 : f32
    %60 = vector.broadcast %cst_19 : f32 to vector<128x128xf32>
    %61 = arith.maximumf %59, %60 : vector<128x128xf32>
    %c1_20 = arith.constant 1 : index
    %c0_21 = arith.constant 0 : index
    %62 = vector.load %arg4[%c1_20, %c0_21] : memref<4x128xf32, #tpu.memory_space<vmem>>, vector<1x128xf32>
    %63 = vector.broadcast %62 : vector<1x128xf32> to vector<128x128xf32>
    %64 = arith.mulf %61, %63 : vector<128x128xf32>
    %c2_22 = arith.constant 2 : index
    %c0_23 = arith.constant 0 : index
    %65 = vector.load %arg4[%c2_22, %c0_23] : memref<4x128xf32, #tpu.memory_space<vmem>>, vector<1x128xf32>
    %66 = vector.broadcast %65 : vector<1x128xf32> to vector<128x128xf32>
    %67 = arith.addf %64, %66 : vector<128x128xf32>
    %68 = vector.shape_cast %21 : vector<128x1xf32> to vector<128x1xf32>
    %69 = vector.broadcast %68 : vector<128x1xf32> to vector<128x128xf32>
    %70 = arith.mulf %67, %69 : vector<128x128xf32>
    %71 = vector.shape_cast %70 : vector<128x128xf32> to vector<8x16x128xf32>
    %cst_24 = arith.constant dense<0.000000e+00> : vector<8x128xf32>
    %72 = vector.multi_reduction <add>, %71, %cst_24 [1] : vector<8x16x128xf32> to vector<8x128xf32>
    %cst_25 = arith.constant 0.0769230798 : f32
    %73 = vector.broadcast %cst_25 : f32 to vector<8x128xf32>
    %74 = arith.mulf %72, %73 : vector<8x128xf32>
    %75 = arith.truncf %74 : vector<8x128xf32> to vector<8x128xbf16>
    %c0_26 = arith.constant 0 : index
    %c0_27 = arith.constant 0 : index
    %76 = vector.load %arg5[%c0_26, %c0_27] : memref<128x128xbf16, #tpu.memory_space<vmem>>, vector<128x128xbf16>
    %cst_28 = arith.constant dense<0.000000e+00> : vector<8x128xf32>
    %77 = tpu.matmul %75, %76, %cst_28 {dimension_numbers = #tpu.dot_dimension_numbers<[1], [0], [0], [1], [0, 0, 1, 1], [], []>} : vector<8x128xbf16>, vector<128x128xbf16>, vector<8x128xf32> -> vector<8x128xf32>
    %c3_29 = arith.constant 3 : index
    %c0_30 = arith.constant 0 : index
    %78 = vector.load %arg4[%c3_29, %c0_30] : memref<4x128xf32, #tpu.memory_space<vmem>>, vector<1x128xf32>
    %79 = vector.broadcast %78 : vector<1x128xf32> to vector<8x128xf32>
    %80 = arith.addf %77, %79 : vector<8x128xf32>
    %c0_31 = arith.constant 0 : index
    %c0_32 = arith.constant 0 : index
    %81 = vector.load %arg6[%c0_31, %c0_32] : memref<8x128xf32, #tpu.memory_space<vmem>>, vector<8x128xf32>
    tpu.vector_store %arg6[%c0_31, %c0_32], %80 {strides = array<i32>} : memref<8x128xf32, #tpu.memory_space<vmem>>, vector<8x128xf32>,
    return
  }
  func.func @transform_0(%arg0: i32) -> (i32, i32) {
    %c0_i32 = arith.constant 0 : i32
    %c0_i32_0 = arith.constant 0 : i32
    return %arg0, %c0_i32 : i32, i32
  }
  func.func @transform_1(%arg0: i32) -> (i32, i32) {
    %c0_i32 = arith.constant 0 : i32
    %c0_i32_0 = arith.constant 0 : i32
    %c0_i32_1 = arith.constant 0 : i32
    return %c0_i32, %c0_i32_0 : i32, i32
  }
  func.func @transform_2(%arg0: i32) -> (i32, i32) {
    %c0_i32 = arith.constant 0 : i32
    %c0_i32_0 = arith.constant 0 : i32
    %c0_i32_1 = arith.constant 0 : i32
    return %c0_i32, %c0_i32_0 : i32, i32
  }
  func.func @transform_3(%arg0: i32) -> (i32, i32) {
    %c0_i32 = arith.constant 0 : i32
    %c0_i32_0 = arith.constant 0 : i32
    %c0_i32_1 = arith.constant 0 : i32
    return %c0_i32, %c0_i32_0 : i32, i32
  }
  func.func @transform_4(%arg0: i32) -> (i32, i32) {
    %c0_i32 = arith.constant 0 : i32
    %c0_i32_0 = arith.constant 0 : i32
    %c0_i32_1 = arith.constant 0 : i32
    return %c0_i32, %c0_i32_0 : i32, i32
  }
  func.func @transform_5(%arg0: i32) -> (i32, i32) {
    %c0_i32 = arith.constant 0 : i32
    %c0_i32_0 = arith.constant 0 : i32
    return %arg0, %c0_i32 : i32, i32
  }
}

</mosaic_0001>

<llo_original>
// kernel: emotion_cnn_forward.1
$region0: #{emotion_cnn_forward.1}
  #allocation0 [shape = 'u32[]', space=smem, size = 0x4, offset = 0x4, fixed_abs, tag = 'smem constant byte address 0x4 - core index']
  #allocation1 [shape = 'u32[144,128]{1,0:T(1,128)}', space=vmem, size = 0x12000, scoped, tag = 'internal scratch']
  %s0 = inlined_call_operand.vmem [shape: f32[128,1], index: 0, kind: input, shape index: {}]
  %s1 = inlined_call_operand.vmem [shape: f32[6,64], index: 1, kind: input, shape index: {}]
  %s2 = inlined_call_operand.vmem [shape: bf16[192,128], index: 2, kind: input, shape index: {}]
  %s3 = inlined_call_operand.vmem [shape: f32[4,128], index: 3, kind: input, shape index: {}]
  %s4 = inlined_call_operand.vmem [shape: bf16[128,128], index: 4, kind: input, shape index: {}]
  %s5 = inlined_call_operand.vmem [shape: f32[8,128], index: 5, kind: output, shape index: {}]
  %s6 = sld [smem:[#allocation0]]
  $region30: #{emotion_cnn_forward.1} parent=0
    _
  %s8 = ssub.s32 1, %s6
  %s9 = scalar_select 0, %s8, %s6
  // Predicated region
  $region2: #{emotion_cnn_forward.1} parent=0 // pred_check
    _
  $region3: #{emotion_cnn_forward.1} parent=0 // pred_check_branch
    %11 = sbr.rel (0) target = $region5
  $region4: #{emotion_cnn_forward.1} parent=0 // pred_region
    _
  $region5: #{emotion_cnn_forward.1} parent=0 // pred_fallthru
    _
  // Predicated region
  $region6: #{emotion_cnn_forward.1} parent=0 // pred_check
    _
  $region7: #{emotion_cnn_forward.1} parent=0 // pred_check_branch
    %13 = sbr.rel (0) target = $region9
  $region8: #{emotion_cnn_forward.1} parent=0 // pred_region
    _
  $region9: #{emotion_cnn_forward.1} parent=0 // pred_fallthru
    _
  // Predicated region
  $region10: #{emotion_cnn_forward.1} parent=0 // pred_check
    _
  $region11: #{emotion_cnn_forward.1} parent=0 // pred_check_branch
    %15 = sbr.rel (0) target = $region13
  $region12: #{emotion_cnn_forward.1} parent=0 // pred_region
    _
  $region13: #{emotion_cnn_forward.1} parent=0 // pred_fallthru
    _
  // Predicated region
  $region14: #{emotion_cnn_forward.1} parent=0 // pred_check
    _
  $region15: #{emotion_cnn_forward.1} parent=0 // pred_check_branch
    %17 = sbr.rel (0) target = $region17
  $region16: #{emotion_cnn_forward.1} parent=0 // pred_region
    _
  $region17: #{emotion_cnn_forward.1} parent=0 // pred_fallthru
    _
  // Predicated region
  $region18: #{emotion_cnn_forward.1} parent=0 // pred_check
    _
  $region19: #{emotion_cnn_forward.1} parent=0 // pred_check_branch
    %19 = sbr.rel (0) target = $region21
  $region20: #{emotion_cnn_forward.1} parent=0 // pred_region
    _
  $region21: #{emotion_cnn_forward.1} parent=0 // pred_fallthru
    _
  %v21 = vld [vmem:[%s0] sm:$0xff]
  %v22 = vld [vmem:[%s0 + $0x8] sm:$0xff]
  %v23 = vld [vmem:[%s0 + $0x10] sm:$0xff]
  %v24 = vld [vmem:[%s0 + $0x18] sm:$0xff]
  %v25 = vld [vmem:[%s0 + $0x20] sm:$0xff]
  %v26 = vld [vmem:[%s0 + $0x28] sm:$0xff]
  %v27 = vld [vmem:[%s0 + $0x30] sm:$0xff]
  %v28 = vld [vmem:[%s0 + $0x38] sm:$0xff]
  %v29 = vld [vmem:[%s0 + $0x40] sm:$0xff]
  %v30 = vld [vmem:[%s0 + $0x48] sm:$0xff]
  %v31 = vld [vmem:[%s0 + $0x50] sm:$0xff]
  %v32 = vld [vmem:[%s0 + $0x58] sm:$0xff]
  %v33 = vld [vmem:[%s0 + $0x60] sm:$0xff]
  %v34 = vld [vmem:[%s0 + $0x68] sm:$0xff]
  %v35 = vld [vmem:[%s0 + $0x70] sm:$0xff]
  %v36 = vld [vmem:[%s0 + $0x78] sm:$0xff]
  %v37 = vlaneseq
  %v38 = vshrl.u32 %v37, 7
  %v39 = vadd.s32 %v38, 8
  %v40 = vadd.s32 %v38, 16
  %v41 = vadd.s32 %v38, 24
  %v42 = vadd.s32 %v38, 32
  %v43 = vadd.s32 %v38, 40
  %v44 = vadd.s32 %v38, 48
  %v45 = vadd.s32 %v38, 56
  %v46 = vadd.s32 %v38, 64
  %v47 = vadd.s32 %v38, 72
  %v48 = vadd.s32 %v38, 80
  %v49 = vadd.s32 %v38, 88
  %v50 = vadd.s32 %v38, 96
  %v51 = vadd.s32 %v38, 104
  %v52 = vadd.s32 %v38, 112
  %v53 = vadd.s32 %v38, 120
  %vm54 = vcmp.lt.s32.totalorder %v38, 0
  %v55 = vsub.s32 0, %v38
  %v56 = vsel %vm54, %v55, %v38
  %v57 = vshrl.u32 %v56, 4
  %v58 = vand.u32 %v56, 15
  %v59 = vsub.s32 0, %v58
  %v60 = vsel %vm54, %v59, %v58
  %vm61 = vcmp.lt.s32.totalorder %v39, 0
  %v62 = vsub.s32 0, %v39
  %v63 = vsel %vm61, %v62, %v39
  %v64 = vshrl.u32 %v63, 4
  %v65 = vand.u32 %v63, 15
  %v66 = vsub.s32 0, %v65
  %v67 = vsel %vm61, %v66, %v65
  %vm68 = vcmp.lt.s32.totalorder %v40, 0
  %v69 = vsub.s32 0, %v40
  %v70 = vsel %vm68, %v69, %v40
  %v71 = vshrl.u32 %v70, 4
  %v72 = vand.u32 %v70, 15
  %v73 = vsub.s32 0, %v72
  %v74 = vsel %vm68, %v73, %v72
  %vm75 = vcmp.lt.s32.totalorder %v41, 0
  %v76 = vsub.s32 0, %v41
  %v77 = vsel %vm75, %v76, %v41
  %v78 = vshrl.u32 %v77, 4
  %v79 = vand.u32 %v77, 15
  %v80 = vsub.s32 0, %v79
  %v81 = vsel %vm75, %v80, %v79
  %vm82 = vcmp.lt.s32.totalorder %v42, 0
  %v83 = vsub.s32 0, %v42
  %v84 = vsel %vm82, %v83, %v42
  %v85 = vshrl.u32 %v84, 4
  %v86 = vand.u32 %v84, 15
  %v87 = vsub.s32 0, %v86
  %v88 = vsel %vm82, %v87, %v86
  %vm89 = vcmp.lt.s32.totalorder %v43, 0
  %v90 = vsub.s32 0, %v43
  %v91 = vsel %vm89, %v90, %v43
  %v92 = vshrl.u32 %v91, 4
  %v93 = vand.u32 %v91, 15
  %v94 = vsub.s32 0, %v93
  %v95 = vsel %vm89, %v94, %v93
  %vm96 = vcmp.lt.s32.totalorder %v44, 0
  %v97 = vsub.s32 0, %v44
  %v98 = vsel %vm96, %v97, %v44
  %v99 = vshrl.u32 %v98, 4
  %v100 = vand.u32 %v98, 15
  %v101 = vsub.s32 0, %v100
  %v102 = vsel %vm96, %v101, %v100
  %vm103 = vcmp.lt.s32.totalorder %v45, 0
  %v104 = vsub.s32 0, %v45
  %v105 = vsel %vm103, %v104, %v45
  %v106 = vshrl.u32 %v105, 4
  %v107 = vand.u32 %v105, 15
  %v108 = vsub.s32 0, %v107
  %v109 = vsel %vm103, %v108, %v107
  %vm110 = vcmp.lt.s32.totalorder %v46, 0
  %v111 = vsub.s32 0, %v46
  %v112 = vsel %vm110, %v111, %v46
  %v113 = vshrl.u32 %v112, 4
  %v114 = vand.u32 %v112, 15
  %v115 = vsub.s32 0, %v114
  %v116 = vsel %vm110, %v115, %v114
  %vm117 = vcmp.lt.s32.totalorder %v47, 0
  %v118 = vsub.s32 0, %v47
  %v119 = vsel %vm117, %v118, %v47
  %v120 = vshrl.u32 %v119, 4
  %v121 = vand.u32 %v119, 15
  %v122 = vsub.s32 0, %v121
  %v123 = vsel %vm117, %v122, %v121
  %vm124 = vcmp.lt.s32.totalorder %v48, 0
  %v125 = vsub.s32 0, %v48
  %v126 = vsel %vm124, %v125, %v48
  %v127 = vshrl.u32 %v126, 4
  %v128 = vand.u32 %v126, 15
  %v129 = vsub.s32 0, %v128
  %v130 = vsel %vm124, %v129, %v128
  %vm131 = vcmp.lt.s32.totalorder %v49, 0
  %v132 = vsub.s32 0, %v49
  %v133 = vsel %vm131, %v132, %v49
  %v134 = vshrl.u32 %v133, 4
  %v135 = vand.u32 %v133, 15
  %v136 = vsub.s32 0, %v135
  %v137 = vsel %vm131, %v136, %v135
  %vm138 = vcmp.lt.s32.totalorder %v50, 0
  %v139 = vsub.s32 0, %v50
  %v140 = vsel %vm138, %v139, %v50
  %v141 = vshrl.u32 %v140, 4
  %v142 = vand.u32 %v140, 15
  %v143 = vsub.s32 0, %v142
  %v144 = vsel %vm138, %v143, %v142
  %vm145 = vcmp.lt.s32.totalorder %v51, 0
  %v146 = vsub.s32 0, %v51
  %v147 = vsel %vm145, %v146, %v51
  %v148 = vshrl.u32 %v147, 4
  %v149 = vand.u32 %v147, 15
  %v150 = vsub.s32 0, %v149
  %v151 = vsel %vm145, %v150, %v149
  %vm152 = vcmp.lt.s32.totalorder %v52, 0
  %v153 = vsub.s32 0, %v52
  %v154 = vsel %vm152, %v153, %v52
  %v155 = vshrl.u32 %v154, 4
  %v156 = vand.u32 %v154, 15
  %v157 = vsub.s32 0, %v156
  %v158 = vsel %vm152, %v157, %v156
  %vm159 = vcmp.lt.s32.totalorder %v53, 0
  %v160 = vsub.s32 0, %v53
  %v161 = vsel %vm159, %v160, %v53
  %v162 = vshrl.u32 %v161, 4
  %v163 = vand.u32 %v161, 15
  %v164 = vsub.s32 0, %v163
  %v165 = vsel %vm159, %v164, %v163
  %vm166 = vcmp.ne.s32.totalorder %v60, 0
  %vm167 = vcmp.ne.s32.totalorder %v67, 0
  %vm168 = vcmp.ne.s32.totalorder %v74, 0
  %vm169 = vcmp.ne.s32.totalorder %v81, 0
  %vm170 = vcmp.ne.s32.totalorder %v88, 0
  %vm171 = vcmp.ne.s32.totalorder %v95, 0
  %vm172 = vcmp.ne.s32.totalorder %v102, 0
  %vm173 = vcmp.ne.s32.totalorder %v109, 0
  %vm174 = vcmp.ne.s32.totalorder %v116, 0
  %vm175 = vcmp.ne.s32.totalorder %v123, 0
  %vm176 = vcmp.ne.s32.totalorder %v130, 0
  %vm177 = vcmp.ne.s32.totalorder %v137, 0
  %vm178 = vcmp.ne.s32.totalorder %v144, 0
  %vm179 = vcmp.ne.s32.totalorder %v151, 0
  %vm180 = vcmp.ne.s32.totalorder %v158, 0
  %vm181 = vcmp.ne.s32.totalorder %v165, 0
  %vm182 = vcmp.lt.s32.totalorder %v60, 0
  %vm183 = vcmp.lt.s32.totalorder %v67, 0
  %vm184 = vcmp.lt.s32.totalorder %v74, 0
  %vm185 = vcmp.lt.s32.totalorder %v81, 0
  %vm186 = vcmp.lt.s32.totalorder %v88, 0
  %vm187 = vcmp.lt.s32.totalorder %v95, 0
  %vm188 = vcmp.lt.s32.totalorder %v102, 0
  %vm189 = vcmp.lt.s32.totalorder %v109, 0
  %vm190 = vcmp.lt.s32.totalorder %v116, 0
  %vm191 = vcmp.lt.s32.totalorder %v123, 0
  %vm192 = vcmp.lt.s32.totalorder %v130, 0
  %vm193 = vcmp.lt.s32.totalorder %v137, 0
  %vm194 = vcmp.lt.s32.totalorder %v144, 0
  %vm195 = vcmp.lt.s32.totalorder %v151, 0
  %vm196 = vcmp.lt.s32.totalorder %v158, 0
  %vm197 = vcmp.lt.s32.totalorder %v165, 0
  %vm198 = vmand %vm182, %vm166
  %vm199 = vmand %vm183, %vm167
  %vm200 = vmand %vm184, %vm168
  %vm201 = vmand %vm185, %vm169
  %vm202 = vmand %vm186, %vm170
  %vm203 = vmand %vm187, %vm171
  %vm204 = vmand %vm188, %vm172
  %vm205 = vmand %vm189, %vm173
  %vm206 = vmand %vm190, %vm174
  %vm207 = vmand %vm191, %vm175
  %vm208 = vmand %vm192, %vm176
  %vm209 = vmand %vm193, %vm177
  %vm210 = vmand %vm194, %vm178
  %vm211 = vmand %vm195, %vm179
  %vm212 = vmand %vm196, %vm180
  %vm213 = vmand %vm197, %vm181
  %v214 = vadd.s32 %v60, 16
  %v215 = vadd.s32 %v67, 16
  %v216 = vadd.s32 %v74, 16
  %v217 = vadd.s32 %v81, 16
  %v218 = vadd.s32 %v88, 16
  %v219 = vadd.s32 %v95, 16
  %v220 = vadd.s32 %v102, 16
  %v221 = vadd.s32 %v109, 16
  %v222 = vadd.s32 %v116, 16
  %v223 = vadd.s32 %v123, 16
  %v224 = vadd.s32 %v130, 16
  %v225 = vadd.s32 %v137, 16
  %v226 = vadd.s32 %v144, 16
  %v227 = vadd.s32 %v151, 16
  %v228 = vadd.s32 %v158, 16
  %v229 = vadd.s32 %v165, 16
  %v230 = vsel %vm198, %v214, %v60
  %v231 = vsel %vm199, %v215, %v67
  %v232 = vsel %vm200, %v216, %v74
  %v233 = vsel %vm201, %v217, %v81
  %v234 = vsel %vm202, %v218, %v88
  %v235 = vsel %vm203, %v219, %v95
  %v236 = vsel %vm204, %v220, %v102
  %v237 = vsel %vm205, %v221, %v109
  %v238 = vsel %vm206, %v222, %v116
  %v239 = vsel %vm207, %v223, %v123
  %v240 = vsel %vm208, %v224, %v130
  %v241 = vsel %vm209, %v225, %v137
  %v242 = vsel %vm210, %v226, %v144
  %v243 = vsel %vm211, %v227, %v151
  %v244 = vsel %vm212, %v228, %v158
  %v245 = vsel %vm213, %v229, %v165
  %vm246 = vcmp.lt.s32.totalorder %v230, 13
  %vm247 = vcmp.lt.s32.totalorder %v231, 13
  %vm248 = vcmp.lt.s32.totalorder %v232, 13
  %vm249 = vcmp.lt.s32.totalorder %v233, 13
  %vm250 = vcmp.lt.s32.totalorder %v234, 13
  %vm251 = vcmp.lt.s32.totalorder %v235, 13
  %vm252 = vcmp.lt.s32.totalorder %v236, 13
  %vm253 = vcmp.lt.s32.totalorder %v237, 13
  %vm254 = vcmp.lt.s32.totalorder %v238, 13
  %vm255 = vcmp.lt.s32.totalorder %v239, 13
  %vm256 = vcmp.lt.s32.totalorder %v240, 13
  %vm257 = vcmp.lt.s32.totalorder %v241, 13
  %vm258 = vcmp.lt.s32.totalorder %v242, 13
  %vm259 = vcmp.lt.s32.totalorder %v243, 13
  %vm260 = vcmp.lt.s32.totalorder %v244, 13
  %vm261 = vcmp.lt.s32.totalorder %v245, 13
  %v262 = vsel %vm246, 1, 0
  %v263 = vsel %vm247, 1, 0
  %v264 = vsel %vm248, 1, 0
  %v265 = vsel %vm249, 1, 0
  %v266 = vsel %vm250, 1, 0
  %v267 = vsel %vm251, 1, 0
  %v268 = vsel %vm252, 1, 0
  %v269 = vsel %vm253, 1, 0
  %v270 = vsel %vm254, 1, 0
  %v271 = vsel %vm255, 1, 0
  %v272 = vsel %vm256, 1, 0
  %v273 = vsel %vm257, 1, 0
  %v274 = vsel %vm258, 1, 0
  %v275 = vsel %vm259, 1, 0
  %v276 = vsel %vm260, 1, 0
  %v277 = vsel %vm261, 1, 0
  %v278 = vcvt.s32.f32 %v262
  %v279 = vcvt.s32.f32 %v263
  %v280 = vcvt.s32.f32 %v264
  %v281 = vcvt.s32.f32 %v265
  %v282 = vcvt.s32.f32 %v266
  %v283 = vcvt.s32.f32 %v267
  %v284 = vcvt.s32.f32 %v268
  %v285 = vcvt.s32.f32 %v269
  %v286 = vcvt.s32.f32 %v270
  %v287 = vcvt.s32.f32 %v271
  %v288 = vcvt.s32.f32 %v272
  %v289 = vcvt.s32.f32 %v273
  %v290 = vcvt.s32.f32 %v274
  %v291 = vcvt.s32.f32 %v275
  %v292 = vcvt.s32.f32 %v276
  %v293 = vcvt.s32.f32 %v277
  %295 = vset.pattern.permute.xlu0 0
  %296 = vperm.xlu0 %295, %v21
  %v297 = vpop.permute.xlu0 %296
  %300 = vset.pattern.permute.xlu0 0
  %301 = vperm.xlu0 %300, %v22
  %v302 = vpop.permute.xlu0 %301
  %305 = vset.pattern.permute.xlu0 0
  %306 = vperm.xlu0 %305, %v23
  %v307 = vpop.permute.xlu0 %306
  %310 = vset.pattern.permute.xlu0 0
  %311 = vperm.xlu0 %310, %v24
  %v312 = vpop.permute.xlu0 %311
  %315 = vset.pattern.permute.xlu0 0
  %316 = vperm.xlu0 %315, %v25
  %v317 = vpop.permute.xlu0 %316
  %320 = vset.pattern.permute.xlu0 0
  %321 = vperm.xlu0 %320, %v26
  %v322 = vpop.permute.xlu0 %321
  %325 = vset.pattern.permute.xlu0 0
  %326 = vperm.xlu0 %325, %v27
  %v327 = vpop.permute.xlu0 %326
  %330 = vset.pattern.permute.xlu0 0
  %331 = vperm.xlu0 %330, %v28
  %v332 = vpop.permute.xlu0 %331
  %335 = vset.pattern.permute.xlu0 0
  %336 = vperm.xlu0 %335, %v29
  %v337 = vpop.permute.xlu0 %336
  %340 = vset.pattern.permute.xlu0 0
  %341 = vperm.xlu0 %340, %v30
  %v342 = vpop.permute.xlu0 %341
  %345 = vset.pattern.permute.xlu0 0
  %346 = vperm.xlu0 %345, %v31
  %v347 = vpop.permute.xlu0 %346
  %350 = vset.pattern.permute.xlu0 0
  %351 = vperm.xlu0 %350, %v32
  %v352 = vpop.permute.xlu0 %351
  %355 = vset.pattern.permute.xlu0 0
  %356 = vperm.xlu0 %355, %v33
  %v357 = vpop.permute.xlu0 %356
  %360 = vset.pattern.permute.xlu0 0
  %361 = vperm.xlu0 %360, %v34
  %v362 = vpop.permute.xlu0 %361
  %365 = vset.pattern.permute.xlu0 0
  %366 = vperm.xlu0 %365, %v35
  %v367 = vpop.permute.xlu0 %366
  %370 = vset.pattern.permute.xlu0 0
  %371 = vperm.xlu0 %370, %v36
  %v372 = vpop.permute.xlu0 %371
  %v374 = vld [vmem:[%s1] sm:$0x1]
  %v375 = vlaneseq
  %v376 = vshrl.u32 %v375, 7
  %v377 = vsub.s32 0, %v376
  %v378 = vrot.slane %v374, %v377
  %v379 = vmul.f32 %v297, %v378
  %v380 = vmul.f32 %v302, %v378
  %v381 = vmul.f32 %v307, %v378
  %v382 = vmul.f32 %v312, %v378
  %v383 = vmul.f32 %v317, %v378
  %v384 = vmul.f32 %v322, %v378
  %v385 = vmul.f32 %v327, %v378
  %v386 = vmul.f32 %v332, %v378
  %v387 = vmul.f32 %v337, %v378
  %v388 = vmul.f32 %v342, %v378
  %v389 = vmul.f32 %v347, %v378
  %v390 = vmul.f32 %v352, %v378
  %v391 = vmul.f32 %v357, %v378
  %v392 = vmul.f32 %v362, %v378
  %v393 = vmul.f32 %v367, %v378
  %v394 = vmul.f32 %v372, %v378
  %v395 = vld [vmem:[%s1 + $0x1] sm:$0x1]
  %v396 = vlaneseq
  %v397 = vshrl.u32 %v396, 7
  %v398 = vsub.s32 0, %v397
  %v399 = vrot.slane %v395, %v398
  %v400 = vmul.f32 %v297, %v399
  %v401 = vmul.f32 %v302, %v399
  %v402 = vmul.f32 %v307, %v399
  %v403 = vmul.f32 %v312, %v399
  %v404 = vmul.f32 %v317, %v399
  %v405 = vmul.f32 %v322, %v399
  %v406 = vmul.f32 %v327, %v399
  %v407 = vmul.f32 %v332, %v399
  %v408 = vmul.f32 %v337, %v399
  %v409 = vmul.f32 %v342, %v399
  %v410 = vmul.f32 %v347, %v399
  %v411 = vmul.f32 %v352, %v399
  %v412 = vmul.f32 %v357, %v399
  %v413 = vmul.f32 %v362, %v399
  %v414 = vmul.f32 %v367, %v399
  %v415 = vmul.f32 %v372, %v399
  %v416 = vld [vmem:[%s1 + $0x2] sm:$0x1]
  %v417 = vlaneseq
  %v418 = vshrl.u32 %v417, 7
  %v419 = vsub.s32 0, %v418
  %v420 = vrot.slane %v416, %v419
  %v421 = vmul.f32 %v297, %v420
  %v422 = vmul.f32 %v302, %v420
  %v423 = vmul.f32 %v307, %v420
  %v424 = vmul.f32 %v312, %v420
  %v425 = vmul.f32 %v317, %v420
  %v426 = vmul.f32 %v322, %v420
  %v427 = vmul.f32 %v327, %v420
  %v428 = vmul.f32 %v332, %v420
  %v429 = vmul.f32 %v337, %v420
  %v430 = vmul.f32 %v342, %v420
  %v431 = vmul.f32 %v347, %v420
  %v432 = vmul.f32 %v352, %v420
  %v433 = vmul.f32 %v357, %v420
  %v434 = vmul.f32 %v362, %v420
  %v435 = vmul.f32 %v367, %v420
  %v436 = vmul.f32 %v372, %v420
  %v437 = vrot.slane %v379, 7
  %v438 = vrot.slane %v380, 7
  %v439 = vrot.slane %v381, 7
  %v440 = vrot.slane %v382, 7
  %v441 = vrot.slane %v383, 7
  %v442 = vrot.slane %v384, 7
  %v443 = vrot.slane %v385, 7
  %v444 = vrot.slane %v386, 7
  %v445 = vrot.slane %v387, 7
  %v446 = vrot.slane %v388, 7
  %v447 = vrot.slane %v389, 7
  %v448 = vrot.slane %v390, 7
  %v449 = vrot.slane %v391, 7
  %v450 = vrot.slane %v392, 7
  %v451 = vrot.slane %v393, 7
  %v452 = vrot.slane %v394, 7
  %vm453 = vcmp.lt.s32.totalorder %v38, 1
  %v454 = vsel %vm453, %v451, %v452
  %v455 = vsel %vm453, %v450, %v451
  %v456 = vsel %vm453, %v449, %v450
  %v457 = vsel %vm453, %v448, %v449
  %v458 = vsel %vm453, %v447, %v448
  %v459 = vsel %vm453, %v446, %v447
  %v460 = vsel %vm453, %v445, %v446
  %v461 = vsel %vm453, %v444, %v445
  %v462 = vsel %vm453, %v443, %v444
  %v463 = vsel %vm453, %v442, %v443
  %v464 = vsel %vm453, %v441, %v442
  %v465 = vsel %vm453, %v440, %v441
  %v466 = vsel %vm453, %v439, %v440
  %v467 = vsel %vm453, %v438, %v439
  %v468 = vsel %vm453, %v437, %v438
  %v469 = vsel %vm453, %v452, %v437
  %v470 = vadd.f32 %v469, %v400
  %v471 = vadd.f32 %v468, %v401
  %v472 = vadd.f32 %v467, %v402
  %v473 = vadd.f32 %v466, %v403
  %v474 = vadd.f32 %v465, %v404
  %v475 = vadd.f32 %v464, %v405
  %v476 = vadd.f32 %v463, %v406
  %v477 = vadd.f32 %v462, %v407
  %v478 = vadd.f32 %v461, %v408
  %v479 = vadd.f32 %v460, %v409
  %v480 = vadd.f32 %v459, %v410
  %v481 = vadd.f32 %v458, %v411
  %v482 = vadd.f32 %v457, %v412
  %v483 = vadd.f32 %v456, %v413
  %v484 = vadd.f32 %v455, %v414
  %v485 = vadd.f32 %v454, %v415
  %v486 = vrot.slane %v421, 1
  %v487 = vrot.slane %v422, 1
  %v488 = vrot.slane %v423, 1
  %v489 = vrot.slane %v424, 1
  %v490 = vrot.slane %v425, 1
  %v491 = vrot.slane %v426, 1
  %v492 = vrot.slane %v427, 1
  %v493 = vrot.slane %v428, 1
  %v494 = vrot.slane %v429, 1
  %v495 = vrot.slane %v430, 1
  %v496 = vrot.slane %v431, 1
  %v497 = vrot.slane %v432, 1
  %v498 = vrot.slane %v433, 1
  %v499 = vrot.slane %v434, 1
  %v500 = vrot.slane %v435, 1
  %v501 = vrot.slane %v436, 1
  %vm502 = vcmp.lt.s32.totalorder %v38, 7
  %v503 = vsel %vm502, %v500, %v501
  %v504 = vsel %vm502, %v499, %v500
  %v505 = vsel %vm502, %v498, %v499
  %v506 = vsel %vm502, %v497, %v498
  %v507 = vsel %vm502, %v496, %v497
  %v508 = vsel %vm502, %v495, %v496
  %v509 = vsel %vm502, %v494, %v495
  %v510 = vsel %vm502, %v493, %v494
  %v511 = vsel %vm502, %v492, %v493
  %v512 = vsel %vm502, %v491, %v492
  %v513 = vsel %vm502, %v490, %v491
  %v514 = vsel %vm502, %v489, %v490
  %v515 = vsel %vm502, %v488, %v489
  %v516 = vsel %vm502, %v487, %v488
  %v517 = vsel %vm502, %v486, %v487
  %v518 = vsel %vm502, %v501, %v486
  %v519 = vadd.f32 %v470, %v517
  %v520 = vadd.f32 %v471, %v516
  %v521 = vadd.f32 %v472, %v515
  %v522 = vadd.f32 %v473, %v514
  %v523 = vadd.f32 %v474, %v513
  %v524 = vadd.f32 %v475, %v512
  %v525 = vadd.f32 %v476, %v511
  %v526 = vadd.f32 %v477, %v510
  %v527 = vadd.f32 %v478, %v509
  %v528 = vadd.f32 %v479, %v508
  %v529 = vadd.f32 %v480, %v507
  %v530 = vadd.f32 %v481, %v506
  %v531 = vadd.f32 %v482, %v505
  %v532 = vadd.f32 %v483, %v504
  %v533 = vadd.f32 %v484, %v503
  %v534 = vadd.f32 %v485, %v518
  %v535 = vld [vmem:[%s1 + $0x3] sm:$0x1]
  %v536 = vlaneseq
  %v537 = vshrl.u32 %v536, 7
  %v538 = vsub.s32 0, %v537
  %v539 = vrot.slane %v535, %v538
  %v540 = vadd.f32 %v519, %v539
  %v541 = vadd.f32 %v520, %v539
  %v542 = vadd.f32 %v521, %v539
  %v543 = vadd.f32 %v522, %v539
  %v544 = vadd.f32 %v523, %v539
  %v545 = vadd.f32 %v524, %v539
  %v546 = vadd.f32 %v525, %v539
  %v547 = vadd.f32 %v526, %v539
  %v548 = vadd.f32 %v527, %v539
  %v549 = vadd.f32 %v528, %v539
  %v550 = vadd.f32 %v529, %v539
  %v551 = vadd.f32 %v530, %v539
  %v552 = vadd.f32 %v531, %v539
  %v553 = vadd.f32 %v532, %v539
  %v554 = vadd.f32 %v533, %v539
  %v555 = vadd.f32 %v534, %v539
  %v556 = vmax.f32 %v540, 0.0
  %v557 = vmax.f32 %v541, 0.0
  %v558 = vmax.f32 %v542, 0.0
  %v559 = vmax.f32 %v543, 0.0
  %v560 = vmax.f32 %v544, 0.0
  %v561 = vmax.f32 %v545, 0.0
  %v562 = vmax.f32 %v546, 0.0
  %v563 = vmax.f32 %v547, 0.0
  %v564 = vmax.f32 %v548, 0.0
  %v565 = vmax.f32 %v549, 0.0
  %v566 = vmax.f32 %v550, 0.0
  %v567 = vmax.f32 %v551, 0.0
  %v568 = vmax.f32 %v552, 0.0
  %v569 = vmax.f32 %v553, 0.0
  %v570 = vmax.f32 %v554, 0.0
  %v571 = vmax.f32 %v555, 0.0
  %v572 = vld [vmem:[%s1 + $0x4] sm:$0x1]
  %v573 = vlaneseq
  %v574 = vshrl.u32 %v573, 7
  %v575 = vsub.s32 0, %v574
  %v576 = vrot.slane %v572, %v575
  %v577 = vmul.f32 %v556, %v576
  %v578 = vmul.f32 %v557, %v576
  %v579 = vmul.f32 %v558, %v576
  %v580 = vmul.f32 %v559, %v576
  %v581 = vmul.f32 %v560, %v576
  %v582 = vmul.f32 %v561, %v576
  %v583 = vmul.f32 %v562, %v576
  %v584 = vmul.f32 %v563, %v576
  %v585 = vmul.f32 %v564, %v576
  %v586 = vmul.f32 %v565, %v576
  %v587 = vmul.f32 %v566, %v576
  %v588 = vmul.f32 %v567, %v576
  %v589 = vmul.f32 %v568, %v576
  %v590 = vmul.f32 %v569, %v576
  %v591 = vmul.f32 %v570, %v576
  %v592 = vmul.f32 %v571, %v576
  %v593 = vld [vmem:[%s1 + $0x5] sm:$0x1]
  %v594 = vlaneseq
  %v595 = vshrl.u32 %v594, 7
  %v596 = vsub.s32 0, %v595
  %v597 = vrot.slane %v593, %v596
  %v598 = vadd.f32 %v577, %v597
  %v599 = vadd.f32 %v578, %v597
  %v600 = vadd.f32 %v579, %v597
  %v601 = vadd.f32 %v580, %v597
  %v602 = vadd.f32 %v581, %v597
  %v603 = vadd.f32 %v582, %v597
  %v604 = vadd.f32 %v583, %v597
  %v605 = vadd.f32 %v584, %v597
  %v606 = vadd.f32 %v585, %v597
  %v607 = vadd.f32 %v586, %v597
  %v608 = vadd.f32 %v587, %v597
  %v609 = vadd.f32 %v588, %v597
  %v610 = vadd.f32 %v589, %v597
  %v611 = vadd.f32 %v590, %v597
  %v612 = vadd.f32 %v591, %v597
  %v613 = vadd.f32 %v592, %v597
  %v614 = vmul.f32 %v598, %v278
  %v615 = vmul.f32 %v599, %v279
  %v616 = vmul.f32 %v600, %v280
  %v617 = vmul.f32 %v601, %v281
  %v618 = vmul.f32 %v602, %v282
  %v619 = vmul.f32 %v603, %v283
  %v620 = vmul.f32 %v604, %v284
  %v621 = vmul.f32 %v605, %v285
  %v622 = vmul.f32 %v606, %v286
  %v623 = vmul.f32 %v607, %v287
  %v624 = vmul.f32 %v608, %v288
  %v625 = vmul.f32 %v609, %v289
  %v626 = vmul.f32 %v610, %v290
  %v627 = vmul.f32 %v611, %v291
  %v628 = vmul.f32 %v612, %v292
  %v629 = vmul.f32 %v613, %v293
  %v630 = vrot.slane %v614, 7
  %v631 = vrot.slane %v615, 7
  %v632 = vrot.slane %v616, 7
  %v633 = vrot.slane %v617, 7
  %v634 = vrot.slane %v618, 7
  %v635 = vrot.slane %v619, 7
  %v636 = vrot.slane %v620, 7
  %v637 = vrot.slane %v621, 7
  %v638 = vrot.slane %v622, 7
  %v639 = vrot.slane %v623, 7
  %v640 = vrot.slane %v624, 7
  %v641 = vrot.slane %v625, 7
  %v642 = vrot.slane %v626, 7
  %v643 = vrot.slane %v627, 7
  %v644 = vrot.slane %v628, 7
  %v645 = vrot.slane %v629, 7
  %v646 = vsel %vm453, %v644, %v645
  %v647 = vsel %vm453, %v643, %v644
  %v648 = vsel %vm453, %v642, %v643
  %v649 = vsel %vm453, %v641, %v642
  %v650 = vsel %vm453, %v640, %v641
  %v651 = vsel %vm453, %v639, %v640
  %v652 = vsel %vm453, %v638, %v639
  %v653 = vsel %vm453, %v637, %v638
  %v654 = vsel %vm453, %v636, %v637
  %v655 = vsel %vm453, %v635, %v636
  %v656 = vsel %vm453, %v634, %v635
  %v657 = vsel %vm453, %v633, %v634
  %v658 = vsel %vm453, %v632, %v633
  %v659 = vsel %vm453, %v631, %v632
  %v660 = vsel %vm453, %v630, %v631
  %v661 = vsel %vm453, %v645, %v630
  %v662 = vrot.slane %v614, 1
  %v663 = vrot.slane %v615, 1
  %v664 = vrot.slane %v616, 1
  %v665 = vrot.slane %v617, 1
  %v666 = vrot.slane %v618, 1
  %v667 = vrot.slane %v619, 1
  %v668 = vrot.slane %v620, 1
  %v669 = vrot.slane %v621, 1
  %v670 = vrot.slane %v622, 1
  %v671 = vrot.slane %v623, 1
  %v672 = vrot.slane %v624, 1
  %v673 = vrot.slane %v625, 1
  %v674 = vrot.slane %v626, 1
  %v675 = vrot.slane %v627, 1
  %v676 = vrot.slane %v628, 1
  %v677 = vrot.slane %v629, 1
  %v678 = vsel %vm502, %v676, %v677
  %v679 = vsel %vm502, %v675, %v676
  %v680 = vsel %vm502, %v674, %v675
  %v681 = vsel %vm502, %v673, %v674
  %v682 = vsel %vm502, %v672, %v673
  %v683 = vsel %vm502, %v671, %v672
  %v684 = vsel %vm502, %v670, %v671
  %v685 = vsel %vm502, %v669, %v670
  %v686 = vsel %vm502, %v668, %v669
  %v687 = vsel %vm502, %v667, %v668
  %v688 = vsel %vm502, %v666, %v667
  %v689 = vsel %vm502, %v665, %v666
  %v690 = vsel %vm502, %v664, %v665
  %v691 = vsel %vm502, %v663, %v664
  %v692 = vsel %vm502, %v662, %v663
  %v693 = vsel %vm502, %v677, %v662
  %710 = vrot.lane.b32.xlu0 %v614, 64
  %v711 = vpop.permute.xlu0 %710
  %712 = vrot.lane.b32.xlu0 %v615, 64
  %v713 = vpop.permute.xlu0 %712
  %714 = vrot.lane.b32.xlu0 %v616, 64
  %v715 = vpop.permute.xlu0 %714
  %716 = vrot.lane.b32.xlu0 %v617, 64
  %v717 = vpop.permute.xlu0 %716
  %718 = vrot.lane.b32.xlu0 %v618, 64
  %v719 = vpop.permute.xlu0 %718
  %720 = vrot.lane.b32.xlu0 %v619, 64
  %v721 = vpop.permute.xlu0 %720
  %722 = vrot.lane.b32.xlu0 %v620, 64
  %v723 = vpop.permute.xlu0 %722
  %724 = vrot.lane.b32.xlu0 %v621, 64
  %v725 = vpop.permute.xlu0 %724
  %726 = vrot.lane.b32.xlu0 %v622, 64
  %v727 = vpop.permute.xlu0 %726
  %728 = vrot.lane.b32.xlu0 %v623, 64
  %v729 = vpop.permute.xlu0 %728
  %730 = vrot.lane.b32.xlu0 %v624, 64
  %v731 = vpop.permute.xlu0 %730
  %732 = vrot.lane.b32.xlu0 %v625, 64
  %v733 = vpop.permute.xlu0 %732
  %734 = vrot.lane.b32.xlu0 %v626, 64
  %v735 = vpop.permute.xlu0 %734
  %736 = vrot.lane.b32.xlu0 %v627, 64
  %v737 = vpop.permute.xlu0 %736
  %738 = vrot.lane.b32.xlu0 %v628, 64
  %v739 = vpop.permute.xlu0 %738
  %740 = vrot.lane.b32.xlu0 %v629, 64
  %v741 = vpop.permute.xlu0 %740
  %vm758 = vcmask 523264
  %v759 = vsel %vm758, %v661, %v711
  %v760 = vsel %vm758, %v660, %v713
  %v761 = vsel %vm758, %v659, %v715
  %v762 = vsel %vm758, %v658, %v717
  %v763 = vsel %vm758, %v657, %v719
  %v764 = vsel %vm758, %v656, %v721
  %v765 = vsel %vm758, %v655, %v723
  %v766 = vsel %vm758, %v654, %v725
  %v767 = vsel %vm758, %v653, %v727
  %v768 = vsel %vm758, %v652, %v729
  %v769 = vsel %vm758, %v651, %v731
  %v770 = vsel %vm758, %v650, %v733
  %v771 = vsel %vm758, %v649, %v735
  %v772 = vsel %vm758, %v648, %v737
  %v773 = vsel %vm758, %v647, %v739
  %v774 = vsel %vm758, %v646, %v741
  %v775 = vpack.c.bf16 %v760, %v759
  %v776 = vpack.c.bf16 %v691, %v692
  %v777 = vpack.c.bf16 %v762, %v761
  %v778 = vpack.c.bf16 %v689, %v690
  %v779 = vpack.c.bf16 %v764, %v763
  %v780 = vpack.c.bf16 %v687, %v688
  %v781 = vpack.c.bf16 %v766, %v765
  %v782 = vpack.c.bf16 %v685, %v686
  %v783 = vpack.c.bf16 %v768, %v767
  %v784 = vpack.c.bf16 %v683, %v684
  %v785 = vpack.c.bf16 %v770, %v769
  %v786 = vpack.c.bf16 %v681, %v682
  %v787 = vpack.c.bf16 %v772, %v771
  %v788 = vpack.c.bf16 %v679, %v680
  %v789 = vpack.c.bf16 %v774, %v773
  %v790 = vpack.c.bf16 %v693, %v678
  %v791 = vld [vmem:[%s2] sm:$0xf]
  %v792 = vld [vmem:[%s2 + $0x4] sm:$0xf]
  %v793 = vld [vmem:[%s2 + $0x8] sm:$0xf]
  %v794 = vld [vmem:[%s2 + $0xc] sm:$0xf]
  %v795 = vld [vmem:[%s2 + $0x10] sm:$0xf]
  %v796 = vld [vmem:[%s2 + $0x14] sm:$0xf]
  %v797 = vld [vmem:[%s2 + $0x18] sm:$0xf]
  %v798 = vld [vmem:[%s2 + $0x1c] sm:$0xf]
  %v799 = vld [vmem:[%s2 + $0x20] sm:$0xf]
  %v800 = vld [vmem:[%s2 + $0x24] sm:$0xf]
  %v801 = vld [vmem:[%s2 + $0x28] sm:$0xf]
  %v802 = vld [vmem:[%s2 + $0x2c] sm:$0xf]
  %v803 = vld [vmem:[%s2 + $0x30] sm:$0xf]
  %v804 = vld [vmem:[%s2 + $0x34] sm:$0xf]
  %v805 = vld [vmem:[%s2 + $0x38] sm:$0xf]
  %v806 = vld [vmem:[%s2 + $0x3c] sm:$0xf]
  %v807 = vld [vmem:[%s2 + $0x40] sm:$0xf]
  %v808 = vld [vmem:[%s2 + $0x44] sm:$0xf]
  %v809 = vld [vmem:[%s2 + $0x48] sm:$0xf]
  %v810 = vld [vmem:[%s2 + $0x4c] sm:$0xf]
  %v811 = vld [vmem:[%s2 + $0x50] sm:$0xf]
  %v812 = vld [vmem:[%s2 + $0x54] sm:$0xf]
  %v813 = vld [vmem:[%s2 + $0x58] sm:$0xf]
  %v814 = vld [vmem:[%s2 + $0x5c] sm:$0xf]
  %v815 = vld [vmem:[%s3] sm:$0x1]
  %v816 = vlaneseq
  %v817 = vshrl.u32 %v816, 7
  %v818 = vsub.s32 0, %v817
  %v819 = vrot.slane %v815, %v818
  %v844 = vunpack.c.l.b16 %v791
  %v845 = vunpack.c.l.b16 %v792
  %v846 = vunpack.c.l.b16 %v793
  %v847 = vunpack.c.l.b16 %v794
  %v848 = vunpack.c.l.b16 %v795
  %v849 = vunpack.c.l.b16 %v796
  %v850 = vunpack.c.l.b16 %v797
  %v851 = vunpack.c.l.b16 %v798
  %v852 = vunpack.c.l.b16 %v799
  %v853 = vunpack.c.l.b16 %v800
  %v854 = vunpack.c.l.b16 %v801
  %v855 = vunpack.c.l.b16 %v802
  %v856 = vunpack.c.l.b16 %v803
  %v857 = vunpack.c.l.b16 %v804
  %v858 = vunpack.c.l.b16 %v805
  %v859 = vunpack.c.l.b16 %v806
  %v860 = vunpack.c.l.b16 %v807
  %v861 = vunpack.c.l.b16 %v808
  %v862 = vunpack.c.l.b16 %v809
  %v863 = vunpack.c.l.b16 %v810
  %v864 = vunpack.c.l.b16 %v811
  %v865 = vunpack.c.l.b16 %v812
  %v866 = vunpack.c.l.b16 %v813
  %v867 = vunpack.c.l.b16 %v814
  %v868 = vpack.c.b16 %v845, %v844
  %v869 = vpack.c.b16 %v847, %v846
  %v870 = vpack.c.b16 %v849, %v848
  %v871 = vpack.c.b16 %v851, %v850
  %v872 = vpack.c.b16 %v853, %v852
  %v873 = vpack.c.b16 %v855, %v854
  %v874 = vpack.c.b16 %v857, %v856
  %v875 = vpack.c.b16 %v859, %v858
  %v876 = vpack.c.b16 %v861, %v860
  %v877 = vpack.c.b16 %v863, %v862
  %v878 = vpack.c.b16 %v865, %v864
  %v879 = vpack.c.b16 %v867, %v866
  %v893 = vsel %vm758, %v776, 0
  %v896 = vsel %vm758, %v778, 0
  %v899 = vsel %vm758, %v780, 0
  %v902 = vsel %vm758, %v782, 0
  %v905 = vsel %vm758, %v784, 0
  %v908 = vsel %vm758, %v786, 0
  %v911 = vsel %vm758, %v788, 0
  %v914 = vsel %vm758, %v790, 0
  %916 = vmatprep.subr.bf16.mxu0 0
  %917 = vmatpush1.bf16.msra.mxu0 %v868
  %918 = vmatprep.subr.bf16.mxu0 0
  %919 = vmatpush1.bf16.msra.mxu0 %v869
  %920 = vmatprep.subr.bf16.mxu0 0
  %921 = vmatpush1.bf16.msra.mxu0 %v870
  %922 = vmatprep.subr.bf16.mxu0 0
  %923 = vmatpush1.bf16.msra.mxu0 %v871
  %924 = vmatprep.subr.bf16.mxu0 0
  %925 = vmatpush1.bf16.msra.mxu0 %v872
  %926 = vmatprep.subr.bf16.mxu0 0
  %927 = vmatpush1.bf16.msra.mxu0 %v873
  %928 = vmatprep.subr.bf16.mxu0 0
  %929 = vmatpush1.bf16.msra.mxu0 %v874
  %930 = vmatprep.subr.bf16.mxu0 0
  %931 = vmatpush1.bf16.msra.mxu0 %v875
  %932 = vmatprep.subr.bf16.mxu0 0
  %933 = vmatpush1.bf16.msra.mxu0 %v876
  %934 = vmatprep.subr.bf16.mxu0 0
  %935 = vmatpush1.bf16.msra.mxu0 %v877
  %936 = vmatprep.subr.bf16.mxu0 0
  %937 = vmatpush1.bf16.msra.mxu0 %v878
  %938 = vmatprep.subr.bf16.mxu0 0
  %939 = vmatpush1.bf16.msra.mxu0 %v879
  %940 = vmatprep.subr.bf16.mxu0 0
  %941 = vmatpush1.bf16.msra.mxu0 0
  %942 = vmatprep.subr.bf16.mxu0 0
  %943 = vmatpush1.bf16.msra.mxu0 0
  %944 = vmatprep.subr.bf16.mxu0 0
  %945 = vmatpush1.bf16.msra.mxu0 0
  %946 = vmatprep.subr.bf16.mxu0 0
  %947 = vmatpush1.bf16.msra.mxu0 0
  %948 = vmatprep.mubr.bf16.mxu0 %v893
  %949 = vmatmul.mubr.bf16.gmra.mrb[0].mxu0 %v775
  %v950 = vpop.f32.mrb[0].mxu0
  %v951 = vadd.f32 %v819, %v950
  %v952 = vpop.f32.mrb[0].mxu0
  %v953 = vpop.f32.mrb[0].mxu0
  %v954 = vadd.f32 %v819, %v953
  %v955 = vpop.f32.mrb[0].mxu0
  %956 = vmatprep.mubr.bf16.mxu0 %v896
  %957 = vmatmul.mubr.bf16.gmra.mrb[0].mxu0 %v777
  %v958 = vpop.f32.mrb[0].mxu0
  %v959 = vadd.f32 %v819, %v958
  %v960 = vpop.f32.mrb[0].mxu0
  %v961 = vpop.f32.mrb[0].mxu0
  %v962 = vadd.f32 %v819, %v961
  %v963 = vpop.f32.mrb[0].mxu0
  %964 = vmatprep.mubr.bf16.mxu0 %v899
  %965 = vmatmul.mubr.bf16.gmra.mrb[0].mxu0 %v779
  %v966 = vpop.f32.mrb[0].mxu0
  %v967 = vadd.f32 %v819, %v966
  %v968 = vpop.f32.mrb[0].mxu0
  %v969 = vpop.f32.mrb[0].mxu0
  %v970 = vadd.f32 %v819, %v969
  %v971 = vpop.f32.mrb[0].mxu0
  %972 = vmatprep.mubr.bf16.mxu0 %v902
  %973 = vmatmul.mubr.bf16.gmra.mrb[0].mxu0 %v781
  %v974 = vpop.f32.mrb[0].mxu0
  %v975 = vadd.f32 %v819, %v974
  %v976 = vpop.f32.mrb[0].mxu0
  %v977 = vpop.f32.mrb[0].mxu0
  %v978 = vadd.f32 %v819, %v977
  %v979 = vpop.f32.mrb[0].mxu0
  %980 = vmatprep.mubr.bf16.mxu0 %v905
  %981 = vmatmul.mubr.bf16.gmra.mrb[0].mxu0 %v783
  %v982 = vpop.f32.mrb[0].mxu0
  %v983 = vadd.f32 %v819, %v982
  %v984 = vpop.f32.mrb[0].mxu0
  %v985 = vpop.f32.mrb[0].mxu0
  %v986 = vadd.f32 %v819, %v985
  %v987 = vpop.f32.mrb[0].mxu0
  %988 = vmatprep.mubr.bf16.mxu0 %v908
  %989 = vmatmul.mubr.bf16.gmra.mrb[0].mxu0 %v785
  %v990 = vpop.f32.mrb[0].mxu0
  %v991 = vadd.f32 %v819, %v990
  %v992 = vpop.f32.mrb[0].mxu0
  %v993 = vpop.f32.mrb[0].mxu0
  %v994 = vadd.f32 %v819, %v993
  %v995 = vpop.f32.mrb[0].mxu0
  %996 = vmatprep.mubr.bf16.mxu0 %v911
  %997 = vmatmul.mubr.bf16.gmra.mrb[0].mxu0 %v787
  %v998 = vpop.f32.mrb[0].mxu0
  %v999 = vadd.f32 %v819, %v998
  %v1000 = vpop.f32.mrb[0].mxu0
  %v1001 = vpop.f32.mrb[0].mxu0
  %v1002 = vadd.f32 %v819, %v1001
  %v1003 = vpop.f32.mrb[0].mxu0
  %1004 = vmatprep.mubr.bf16.mxu0 %v914
  %1005 = vmatmul.mubr.bf16.gmra.mrb[0].mxu0 %v789
  %v1006 = vpop.f32.mrb[0].mxu0
  %v1007 = vadd.f32 %v819, %v1006
  %v1008 = vpop.f32.mrb[0].mxu0
  %v1009 = vpop.f32.mrb[0].mxu0
  %v1010 = vadd.f32 %v819, %v1009
  %v1011 = vpop.f32.mrb[0].mxu0
  %1012 = vdwg.mxu0
  %v1013 = vmax.f32 %v951, 0.0
  %v1014 = vmax.f32 %v954, 0.0
  %v1015 = vmax.f32 %v959, 0.0
  %v1016 = vmax.f32 %v962, 0.0
  %v1017 = vmax.f32 %v967, 0.0
  %v1018 = vmax.f32 %v970, 0.0
  %v1019 = vmax.f32 %v975, 0.0
  %v1020 = vmax.f32 %v978, 0.0
  %v1021 = vmax.f32 %v983, 0.0
  %v1022 = vmax.f32 %v986, 0.0
  %v1023 = vmax.f32 %v991, 0.0
  %v1024 = vmax.f32 %v994, 0.0
  %v1025 = vmax.f32 %v999, 0.0
  %v1026 = vmax.f32 %v1002, 0.0
  %v1027 = vmax.f32 %v1007, 0.0
  %v1028 = vmax.f32 %v1010, 0.0
  %v1029 = vld [vmem:[%s3 + $0x1] sm:$0x1]
  %v1030 = vlaneseq
  %v1031 = vshrl.u32 %v1030, 7
  %v1032 = vsub.s32 0, %v1031
  %v1033 = vrot.slane %v1029, %v1032
  %v1034 = vmul.f32 %v1013, %v1033
  %v1035 = vmul.f32 %v1014, %v1033
  %v1036 = vmul.f32 %v1015, %v1033
  %v1037 = vmul.f32 %v1016, %v1033
  %v1038 = vmul.f32 %v1017, %v1033
  %v1039 = vmul.f32 %v1018, %v1033
  %v1040 = vmul.f32 %v1019, %v1033
  %v1041 = vmul.f32 %v1020, %v1033
  %v1042 = vmul.f32 %v1021, %v1033
  %v1043 = vmul.f32 %v1022, %v1033
  %v1044 = vmul.f32 %v1023, %v1033
  %v1045 = vmul.f32 %v1024, %v1033
  %v1046 = vmul.f32 %v1025, %v1033
  %v1047 = vmul.f32 %v1026, %v1033
  %v1048 = vmul.f32 %v1027, %v1033
  %v1049 = vmul.f32 %v1028, %v1033
  %v1050 = vld [vmem:[%s3 + $0x2] sm:$0x1]
  %v1051 = vlaneseq
  %v1052 = vshrl.u32 %v1051, 7
  %v1053 = vsub.s32 0, %v1052
  %v1054 = vrot.slane %v1050, %v1053
  %v1055 = vadd.f32 %v1034, %v1054
  %v1056 = vadd.f32 %v1035, %v1054
  %v1057 = vadd.f32 %v1036, %v1054
  %v1058 = vadd.f32 %v1037, %v1054
  %v1059 = vadd.f32 %v1038, %v1054
  %v1060 = vadd.f32 %v1039, %v1054
  %v1061 = vadd.f32 %v1040, %v1054
  %v1062 = vadd.f32 %v1041, %v1054
  %v1063 = vadd.f32 %v1042, %v1054
  %v1064 = vadd.f32 %v1043, %v1054
  %v1065 = vadd.f32 %v1044, %v1054
  %v1066 = vadd.f32 %v1045, %v1054
  %v1067 = vadd.f32 %v1046, %v1054
  %v1068 = vadd.f32 %v1047, %v1054
  %v1069 = vadd.f32 %v1048, %v1054
  %v1070 = vadd.f32 %v1049, %v1054
  %v1071 = vmul.f32 %v1055, %v278
  %v1072 = vmul.f32 %v1056, %v279
  %v1073 = vmul.f32 %v1057, %v280
  %v1074 = vmul.f32 %v1058, %v281
  %v1075 = vmul.f32 %v1059, %v282
  %v1076 = vmul.f32 %v1060, %v283
  %v1077 = vmul.f32 %v1061, %v284
  %v1078 = vmul.f32 %v1062, %v285
  %v1079 = vmul.f32 %v1063, %v286
  %v1080 = vmul.f32 %v1064, %v287
  %v1081 = vmul.f32 %v1065, %v288
  %v1082 = vmul.f32 %v1066, %v289
  %v1083 = vmul.f32 %v1067, %v290
  %v1084 = vmul.f32 %v1068, %v291
  %v1085 = vmul.f32 %v1069, %v292
  %v1086 = vmul.f32 %v1070, %v293
  %v1087 = vadd.f32 %v1071, %v1072
  %v1088 = vrot.slane %v1087, 4
  %v1089 = vadd.f32 %v1087, %v1088
  %v1090 = vrot.slane %v1089, 2
  %v1091 = vadd.f32 %v1089, %v1090
  %v1092 = vrot.slane %v1091, 1
  %v1093 = vadd.f32 %v1091, %v1092
  %v1094 = vadd.f32 %v1073, %v1074
  %v1095 = vrot.slane %v1094, 4
  %v1096 = vadd.f32 %v1094, %v1095
  %v1097 = vrot.slane %v1096, 2
  %v1098 = vadd.f32 %v1096, %v1097
  %v1099 = vrot.slane %v1098, 1
  %v1100 = vadd.f32 %v1098, %v1099
  %v1101 = vadd.f32 %v1075, %v1076
  %v1102 = vrot.slane %v1101, 4
  %v1103 = vadd.f32 %v1101, %v1102
  %v1104 = vrot.slane %v1103, 2
  %v1105 = vadd.f32 %v1103, %v1104
  %v1106 = vrot.slane %v1105, 1
  %v1107 = vadd.f32 %v1105, %v1106
  %v1108 = vadd.f32 %v1077, %v1078
  %v1109 = vrot.slane %v1108, 4
  %v1110 = vadd.f32 %v1108, %v1109
  %v1111 = vrot.slane %v1110, 2
  %v1112 = vadd.f32 %v1110, %v1111
  %v1113 = vrot.slane %v1112, 1
  %v1114 = vadd.f32 %v1112, %v1113
  %v1115 = vadd.f32 %v1079, %v1080
  %v1116 = vrot.slane %v1115, 4
  %v1117 = vadd.f32 %v1115, %v1116
  %v1118 = vrot.slane %v1117, 2
  %v1119 = vadd.f32 %v1117, %v1118
  %v1120 = vrot.slane %v1119, 1
  %v1121 = vadd.f32 %v1119, %v1120
  %v1122 = vadd.f32 %v1081, %v1082
  %v1123 = vrot.slane %v1122, 4
  %v1124 = vadd.f32 %v1122, %v1123
  %v1125 = vrot.slane %v1124, 2
  %v1126 = vadd.f32 %v1124, %v1125
  %v1127 = vrot.slane %v1126, 1
  %v1128 = vadd.f32 %v1126, %v1127
  %v1129 = vadd.f32 %v1083, %v1084
  %v1130 = vrot.slane %v1129, 4
  %v1131 = vadd.f32 %v1129, %v1130
  %v1132 = vrot.slane %v1131, 2
  %v1133 = vadd.f32 %v1131, %v1132
  %v1134 = vrot.slane %v1133, 1
  %v1135 = vadd.f32 %v1133, %v1134
  %v1136 = vadd.f32 %v1085, %v1086
  %v1137 = vrot.slane %v1136, 4
  %v1138 = vadd.f32 %v1136, %v1137
  %v1139 = vrot.slane %v1138, 2
  %v1140 = vadd.f32 %v1138, %v1139
  %v1141 = vrot.slane %v1140, 1
  %v1142 = vadd.f32 %v1140, %v1141
  %v1143 = vmul.f32 %v1093, 0.07692308
  %v1144 = vmul.f32 %v1100, 0.07692308
  %v1145 = vmul.f32 %v1107, 0.07692308
  %v1146 = vmul.f32 %v1114, 0.07692308
  %v1147 = vmul.f32 %v1121, 0.07692308
  %v1148 = vmul.f32 %v1128, 0.07692308
  %v1149 = vmul.f32 %v1135, 0.07692308
  %v1150 = vmul.f32 %v1142, 0.07692308
  %v1151 = vpack.c.bf16 %v1143, %v1143
  %v1152 = vpack.c.bf16 %v1144, %v1144
  %v1153 = vpack.c.bf16 %v1145, %v1145
  %v1154 = vpack.c.bf16 %v1146, %v1146
  %v1155 = vpack.c.bf16 %v1147, %v1147
  %v1156 = vpack.c.bf16 %v1148, %v1148
  %v1157 = vpack.c.bf16 %v1149, %v1149
  %v1158 = vpack.c.bf16 %v1150, %v1150
  %v1159 = vld [vmem:[%s4] sm:$0xf]
  %v1160 = vld [vmem:[%s4 + $0x4] sm:$0xf]
  %v1161 = vld [vmem:[%s4 + $0x8] sm:$0xf]
  %v1162 = vld [vmem:[%s4 + $0xc] sm:$0xf]
  %v1163 = vld [vmem:[%s4 + $0x10] sm:$0xf]
  %v1164 = vld [vmem:[%s4 + $0x14] sm:$0xf]
  %v1165 = vld [vmem:[%s4 + $0x18] sm:$0xf]
  %v1166 = vld [vmem:[%s4 + $0x1c] sm:$0xf]
  %v1167 = vld [vmem:[%s4 + $0x20] sm:$0xf]
  %v1168 = vld [vmem:[%s4 + $0x24] sm:$0xf]
  %v1169 = vld [vmem:[%s4 + $0x28] sm:$0xf]
  %v1170 = vld [vmem:[%s4 + $0x2c] sm:$0xf]
  %v1171 = vld [vmem:[%s4 + $0x30] sm:$0xf]
  %v1172 = vld [vmem:[%s4 + $0x34] sm:$0xf]
  %v1173 = vld [vmem:[%s4 + $0x38] sm:$0xf]
  %v1174 = vld [vmem:[%s4 + $0x3c] sm:$0xf]
  %v1175 = vld [vmem:[%s3 + $0x3] sm:$0x1]
  %v1176 = vlaneseq
  %v1177 = vshrl.u32 %v1176, 7
  %v1178 = vsub.s32 0, %v1177
  %v1179 = vrot.slane %v1175, %v1178
  %v1188 = vunpack.c.l.b16 %v1151
  %v1189 = vunpack.c.l.b16 %v1152
  %v1190 = vunpack.c.l.b16 %v1153
  %v1191 = vunpack.c.l.b16 %v1154
  %v1192 = vunpack.c.l.b16 %v1155
  %v1193 = vunpack.c.l.b16 %v1156
  %v1194 = vunpack.c.l.b16 %v1157
  %v1195 = vunpack.c.l.b16 %v1158
  %vm1196 = vcmask 1041409
  %v1197 = vsel %vm1196, %v1189, %v1188
  %vm1198 = vcmask 1042434
  %v1199 = vsel %vm1198, %v1190, %v1197
  %vm1200 = vcmask 1043459
  %v1201 = vsel %vm1200, %v1191, %v1199
  %vm1202 = vcmask 1044484
  %v1203 = vsel %vm1202, %v1192, %v1201
  %vm1204 = vcmask 1045509
  %v1205 = vsel %vm1204, %v1193, %v1203
  %vm1206 = vcmask 1046534
  %v1207 = vsel %vm1206, %v1194, %v1205
  %vm1208 = vcmask 1047559
  %v1209 = vsel %vm1208, %v1195, %v1207
  %v1210 = vpack.c.b16 %v1209, %v1209
  %v1228 = vunpack.c.l.b16 %v1159
  %v1229 = vunpack.c.l.b16 %v1160
  %v1230 = vunpack.c.l.b16 %v1161
  %v1231 = vunpack.c.l.b16 %v1162
  %v1232 = vunpack.c.l.b16 %v1163
  %v1233 = vunpack.c.l.b16 %v1164
  %v1234 = vunpack.c.l.b16 %v1165
  %v1235 = vunpack.c.l.b16 %v1166
  %v1236 = vunpack.c.l.b16 %v1167
  %v1237 = vunpack.c.l.b16 %v1168
  %v1238 = vunpack.c.l.b16 %v1169
  %v1239 = vunpack.c.l.b16 %v1170
  %v1240 = vunpack.c.l.b16 %v1171
  %v1241 = vunpack.c.l.b16 %v1172
  %v1242 = vunpack.c.l.b16 %v1173
  %v1243 = vunpack.c.l.b16 %v1174
  %v1244 = vpack.c.b16 %v1229, %v1228
  %v1245 = vpack.c.b16 %v1231, %v1230
  %v1246 = vpack.c.b16 %v1233, %v1232
  %v1247 = vpack.c.b16 %v1235, %v1234
  %v1248 = vpack.c.b16 %v1237, %v1236
  %v1249 = vpack.c.b16 %v1239, %v1238
  %v1250 = vpack.c.b16 %v1241, %v1240
  %v1251 = vpack.c.b16 %v1243, %v1242
  %1260 = vmatprep.subr.bf16.mxu0 0
  %1261 = vmatpush1.bf16.msra.mxu0 %v1244
  %1262 = vmatprep.subr.bf16.mxu0 0
  %1263 = vmatpush1.bf16.msra.mxu0 %v1245
  %1264 = vmatprep.subr.bf16.mxu0 0
  %1265 = vmatpush1.bf16.msra.mxu0 %v1246
  %1266 = vmatprep.subr.bf16.mxu0 0
  %1267 = vmatpush1.bf16.msra.mxu0 %v1247
  %1268 = vmatprep.subr.bf16.mxu0 0
  %1269 = vmatpush1.bf16.msra.mxu0 %v1248
  %1270 = vmatprep.subr.bf16.mxu0 0
  %1271 = vmatpush1.bf16.msra.mxu0 %v1249
  %1272 = vmatprep.subr.bf16.mxu0 0
  %1273 = vmatpush1.bf16.msra.mxu0 %v1250
  %1274 = vmatprep.subr.bf16.mxu0 0
  %1275 = vmatpush1.bf16.msra.mxu0 %v1251
  %1276 = vmatprep.subr.bf16.mxu0 0
  %1277 = vmatpush1.bf16.msra.mxu0 0
  %1278 = vmatprep.subr.bf16.mxu0 0
  %1279 = vmatpush1.bf16.msra.mxu0 0
  %1280 = vmatprep.subr.bf16.mxu0 0
  %1281 = vmatpush1.bf16.msra.mxu0 0
  %1282 = vmatprep.subr.bf16.mxu0 0
  %1283 = vmatpush1.bf16.msra.mxu0 0
  %1284 = vmatprep.subr.bf16.mxu0 0
  %1285 = vmatpush1.bf16.msra.mxu0 0
  %1286 = vmatprep.subr.bf16.mxu0 0
  %1287 = vmatpush1.bf16.msra.mxu0 0
  %1288 = vmatprep.subr.bf16.mxu0 0
  %1289 = vmatpush1.bf16.msra.mxu0 0
  %1290 = vmatprep.subr.bf16.mxu0 0
  %1291 = vmatpush1.bf16.msra.mxu0 0
  %1292 = vmatprep.mubr.bf16.mxu0 0
  %1293 = vmatmul.mubr.bf16.gmra.mrb[0].mxu0 %v1210
  %v1294 = vpop.f32.mrb[0].mxu0
  %v1295 = vadd.f32 %v1179, %v1294
  %v1296 = vpop.f32.mrb[0].mxu0
  %v1297 = vpop.f32.mrb[0].mxu0
  %v1298 = vpop.f32.mrb[0].mxu0
  %1299 = vdwg.mxu0
  %1300 = vst [vmem:[%s5] sm:$0xff] %v1295
  // Predicated region
  $region22: #{emotion_cnn_forward.1} parent=0 // pred_check
    _
  $region23: #{emotion_cnn_forward.1} parent=0 // pred_check_branch
    %1302 = sbr.rel (0) target = $region25
  $region24: #{emotion_cnn_forward.1} parent=0 // pred_region
    _
  $region25: #{emotion_cnn_forward.1} parent=0 // pred_fallthru
    _
  // Predicated region
  $region26: #{emotion_cnn_forward.1} parent=0 // pred_check
    _
  $region27: #{emotion_cnn_forward.1} parent=0 // pred_check_branch
    %1304 = sbr.rel (0) target = $region29
  $region28: #{emotion_cnn_forward.1} parent=0 // pred_region
    _
  $region29: #{emotion_cnn_forward.1} parent=0 // pred_fallthru
    _

</llo_original>
